<compile_context>
chip_gen: v5e
topology: v5e:2x2
jax: 0.10.0
libtpu: 0.0.40
codegen_flags: <defaults>
</compile_context>

<pallas_src>
import math

import jax
import jax.numpy as jnp
from jax.experimental import pallas as pl
from jax.experimental.pallas import tpu as pltpu


def _embedding_kernel(tok_ref, table_ref, out_ref):
    # tok_ref:   (1, TB)       int32   -- lane-dense token ids for this block
    # table_ref: (V, E_pad)    float32 -- full embedding table (grid-invariant)
    # out_ref:   (TB, E_pad)   float32
    tok = tok_ref[...]                                    # (1, TB)
    vocab = table_ref.shape[0]
    tb = tok.shape[1]

    # one-hot, vocab along sublanes, tokens along lanes: onehot[v, t] = (v == tok[t])
    row_ids = jax.lax.broadcasted_iota(jnp.int32, (vocab, tb), 0)
    onehot_vt = (row_ids == tok).astype(table_ref.dtype)  # (V, TB)

    # Contract the V axis directly (LHS dim 0 vs RHS dim 0) -> (TB, E_pad).
    # No explicit transpose of the one-hot; HIGHEST precision keeps the f32
    # row selection exact (one-hot times f32 values, f32 accumulate).
    out_ref[...] = jax.lax.dot_general(
        onehot_vt,
        table_ref[...],
        dimension_numbers=(((0,), (0,)), ((), ())),
        preferred_element_type=jnp.float32,
        precision=jax.lax.Precision.HIGHEST,
    ).astype(out_ref.dtype)


def token_embedding(tokens: jax.Array, table: jax.Array, *, tok_block: int = 512):
    """tokens: int array (any shape), table: (V, E) float32 -> tokens.shape + (E,)."""
    V, E = table.shape
    tok_shape = tuple(tokens.shape)
    n_tok = math.prod(tok_shape)

    # Pad E to a multiple of 128 so every output store is a full-lane vst.
    E_pad = ((E + 127) // 128) * 128
    table_p = table if E_pad == E else jnp.pad(table, ((0, 0), (0, E_pad - E)))

    # Pick the token block: a multiple of 128 lanes, no larger than needed for
    # the (padded) token count, capped at the requested tok_block.
    n_tok_pad128 = ((max(n_tok, 1) + 127) // 128) * 128
    tb = max(128, min(((tok_block + 127) // 128) * 128, n_tok_pad128))

    n_blocks = pl.cdiv(n_tok, tb)
    n_pad = n_blocks * tb
    tok_flat = tokens.reshape(-1).astype(jnp.int32)
    if n_pad != n_tok:
        # Pad ids = 0 (a valid row); padded rows are sliced off below.
        tok_flat = jnp.pad(tok_flat, (0, n_pad - n_tok))
    tok_row = tok_flat.reshape(1, n_pad)  # lane-dense layout for (1, TB) blocks

    # VMEM budget: table single-buffered (grid-invariant, DMA fires once),
    # token and output blocks double-buffered by the pipeline.
    itemsize = jnp.dtype(table.dtype).itemsize
    table_bytes = V * E_pad * itemsize
    tok_bytes = tb * 4
    out_bytes = tb * E_pad * itemsize
    est = table_bytes + 2 * (tok_bytes + out_bytes)

    # Generation-aware cap (~85% of physical VMEM: ~56 MiB on v7x per TC,
    # ~110 MiB on v5e/v6e).
    try:
        vmem_cap = int(pltpu.get_tpu_info().vmem_capacity_bytes)
    except Exception:
        vmem_cap = 64 << 20  # conservative fallback (v7x per-TC)
    vmem_budget = int(0.85 * vmem_cap)
    if est > vmem_budget:
        # TODO(synk): route to the HBM-resident DMA-gather path for large vocabs.
        raise ValueError(
            f"Embedding table ({table_bytes} B) + pipeline buffers ({est} B) exceed "
            f"the VMEM budget ({vmem_budget} B); use the HBM-gather path."
        )
    vmem_limit = int(min(est + (4 << 20), vmem_budget))

    # Single-buffer the grid-invariant table if this JAX version supports
    # pipeline_mode; otherwise fall back to the default (still correct).
    try:
        table_spec = pl.BlockSpec(
            (V, E_pad), lambda i: (0, 0), pipeline_mode=pl.Buffered(1)
        )
    except TypeError:
        table_spec = pl.BlockSpec((V, E_pad), lambda i: (0, 0))

    out_flat = pl.pallas_call(
        _embedding_kernel,
        out_shape=jax.ShapeDtypeStruct((n_pad, E_pad), table.dtype),
        grid=(n_blocks,),
        in_specs=[
            pl.BlockSpec((1, tb), lambda i: (0, i)),  # lane-dense token ids
            table_spec,                               # full table, DMA'd once
        ],
        out_specs=pl.BlockSpec((tb, E_pad), lambda i: (i, 0)),
        compiler_params=pltpu.CompilerParams(
            # 'parallel' keeps the token axis shardable across the 2 TCs on v7x
            # (each TC then holds its own table copy — accounted for per-TC above).
            dimension_semantics=("parallel",),
            vmem_limit_bytes=vmem_limit,
        ),
    )(tok_row, table_p)

    out = out_flat[:n_tok, :E]
    return out.reshape(*tok_shape, E)


if __name__ == "__main__":
    # Small, deterministic setup consistent with TokenEmbedding(emb_size, vocab_size).
    emb_size = 128
    vocab_size = 128
    B, S = 2, 8

    key = jax.random.PRNGKey(0)
    k_tab, k_tok = jax.random.split(key)

    # nn.Embedding default init is N(0, 1); reproduce deterministically.
    table = jax.random.normal(k_tab, (vocab_size, emb_size), dtype=jnp.float32)
    tokens = jax.random.randint(
        k_tok, (B, S), minval=0, maxval=vocab_size, dtype=jnp.int32
    )

    out = token_embedding(tokens, table)
    out = jax.block_until_ready(out)

    # Reference: plain JAX gather (same as PyTorch embedding lookup).
    ref = table[tokens]
    assert out.shape == (B, S, emb_size)
    assert jnp.allclose(out, ref, atol=1e-6), "mismatch vs reference gather"

    print("KERNEL_OK")
</pallas_src>

<mosaic_0001>
module attributes {stable_mosaic.version = 11 : i64} {
  func.func @_embedding_kernel(%arg0: i32, %arg1: memref<1x128xi32, #tpu.memory_space<vmem>>, %arg2: memref<128x128xf32, #tpu.memory_space<vmem>>, %arg3: memref<128x128xf32, #tpu.memory_space<vmem>>) attributes {dimension_semantics = [#tpu.dimension_semantics<parallel>], iteration_bounds = array<i64: 1>, scalar_prefetch = 0 : i64, scratch_operands = 0 : i64, tpu.core_type = #tpu.core_type<tc>, window_params = [{transform_indices = @transform_0, window_bounds = array<i64: 1, 128>}, {pipeline_mode = #tpu.pipeline_mode<synchronous>, transform_indices = @transform_1, window_bounds = array<i64: 128, 128>}, {transform_indices = @transform_2, window_bounds = array<i64: 128, 128>}]} {
    %c0 = arith.constant 0 : index
    %c0_0 = arith.constant 0 : index
    %0 = vector.load %arg1[%c0, %c0_0] : memref<1x128xi32, #tpu.memory_space<vmem>>, vector<1x128xi32>
    %1 = tpu.iota {dimensions = array<i32: 0>} : vector<128x128xi32>
    %2 = vector.broadcast %0 : vector<1x128xi32> to vector<128x128xi32>
    %3 = arith.cmpi eq, %1, %2 : vector<128x128xi32>
    %4 = arith.extui %3 : vector<128x128xi1> to vector<128x128xi32>
    %5 = arith.sitofp %4 : vector<128x128xi32> to vector<128x128xf32>
    %c0_1 = arith.constant 0 : index
    %c0_2 = arith.constant 0 : index
    %6 = vector.load %arg2[%c0_1, %c0_2] : memref<128x128xf32, #tpu.memory_space<vmem>>, vector<128x128xf32>
    %cst = arith.constant dense<0.000000e+00> : vector<128x128xf32>
    %7 = tpu.matmul %5, %6, %cst {dimension_numbers = #tpu.dot_dimension_numbers<[0], [0], [1], [1], [0, 1, 1, 1], [], []>, precision = #tpu.contract_precision<fp32>} : vector<128x128xf32>, vector<128x128xf32>, vector<128x128xf32> -> vector<128x128xf32>
    %c0_3 = arith.constant 0 : index
    %c0_4 = arith.constant 0 : index
    %8 = vector.load %arg3[%c0_3, %c0_4] : memref<128x128xf32, #tpu.memory_space<vmem>>, vector<128x128xf32>
    tpu.vector_store %arg3[%c0_3, %c0_4], %7 {strides = array<i32>} : memref<128x128xf32, #tpu.memory_space<vmem>>, vector<128x128xf32>,
    return
  }
  func.func @transform_0(%arg0: i32) -> (i32, i32) {
    %c0_i32 = arith.constant 0 : i32
    %c0_i32_0 = arith.constant 0 : i32
    return %c0_i32, %arg0 : i32, i32
  }
  func.func @transform_1(%arg0: i32) -> (i32, i32) {
    %c0_i32 = arith.constant 0 : i32
    %c0_i32_0 = arith.constant 0 : i32
    %c0_i32_1 = arith.constant 0 : i32
    return %c0_i32, %c0_i32_0 : i32, i32
  }
  func.func @transform_2(%arg0: i32) -> (i32, i32) {
    %c0_i32 = arith.constant 0 : i32
    %c0_i32_0 = arith.constant 0 : i32
    return %arg0, %c0_i32 : i32, i32
  }
}

</mosaic_0001>

<llo_original>
// kernel: tpu_custom_call.1
$region0: #{tpu_custom_call.1}
  #allocation0 [shape = 'u32[]', space=smem, size = 0x4, offset = 0x4, fixed_abs, tag = 'smem constant byte address 0x4 - core index']
  #allocation1 [shape = 'u32[72,128]{1,0:T(1,128)}', space=vmem, size = 0x9000, scoped, tag = 'internal scratch']
  %s0 = inlined_call_operand.hbm [shape: s32[1,128], index: 0, kind: input, shape index: {}]
  %s1 = inlined_call_operand.hbm [shape: f32[128,128], index: 1, kind: input, shape index: {}]
  %s2 = inlined_call_operand.hbm [shape: f32[128,128], index: 2, kind: output, shape index: {}]
  %s3 = sld [smem:[#allocation0]]
  $region26: #{tpu_custom_call.1} parent=0
    _
  %s5 = ssub.s32 1, %s3
  %s6 = scalar_select 0, %s5, %s3
  $region1: #{tpu_custom_call.1} parent=0
    #allocation2 [shape = 'u8[512]{0}', space=vmem, size = 0x400, scoped, tag = 'input window, operand 0, single buffered']
    #allocation3 [shape = 's32[1]{0}', space=sflag, size = 0x4, scoped, tag = 'scoped memory for tpu_custom_call.1']
    #allocation4 [shape = 's32[1]{0}', space=sflag, size = 0x4, scoped, tag = 'scoped memory for tpu_custom_call.1']
    #allocation5 [shape = 'u8[65536]{0}', space=vmem, size = 0x10000, scoped, tag = 'input window, operand 1, single buffered']
    #allocation6 [shape = 's32[1]{0}', space=sflag, size = 0x4, scoped, tag = 'scoped memory for tpu_custom_call.1']
    #allocation7 [shape = 'u8[65536]{0}', space=vmem, size = 0x10000, scoped, tag = 'output window, operand 0, single buffered']
    %7 = vsyncpa [#allocation3], 0
    %8 = vsyncpa [#allocation6], 0
    %9 = vsyncpa [#allocation4], 0
    // Predicated region
    $region2: #{tpu_custom_call.1} parent=1 // pred_check
      _
    $region3: #{tpu_custom_call.1} parent=1 // pred_check_branch
      %11 = sbr.rel (0) target = $region5
    $region4: #{tpu_custom_call.1} parent=1 // pred_region
      %13 = vsyncadd [#allocation3], 0
      %s15 = sshll.u32 %s0, 4
      %s16 = int_to_ptr.hbm [resolvable:$true] %s15
      %s17 = sshll.u32 [#allocation2], 4
      %s18 = int_to_ptr.vmem [resolvable:$true] %s17
      %20 = dma.hbm_to_vmem [thread:$0]  %s16, 16, %s18, [#allocation3]
    $region5: #{tpu_custom_call.1} parent=1 // pred_fallthru
      _
    // Predicated region
    $region6: #{tpu_custom_call.1} parent=1 // pred_check
      _
    $region7: #{tpu_custom_call.1} parent=1 // pred_check_branch
      %22 = sbr.rel (0) target = $region9
    $region8: #{tpu_custom_call.1} parent=1 // pred_region
      %24 = vsyncadd [#allocation6], 0
      %s25 = sshll.u32 %s1, 4
      %s26 = int_to_ptr.hbm [resolvable:$true] %s25
      %s27 = sshll.u32 [#allocation5], 4
      %s28 = int_to_ptr.vmem [resolvable:$true] %s27
      %33 = dma.hbm_to_vmem [thread:$0]  %s26, 2048, %s28, [#allocation6], 128, 128, 8
    $region9: #{tpu_custom_call.1} parent=1 // pred_fallthru
      _
    // Predicated region
    $region10: #{tpu_custom_call.1} parent=1 // pred_check
      _
    $region11: #{tpu_custom_call.1} parent=1 // pred_check_branch
      %35 = sbr.rel (0) target = $region13
    $region12: #{tpu_custom_call.1} parent=1 // pred_region
      %37 = dma.done [#allocation3], 16
    $region13: #{tpu_custom_call.1} parent=1 // pred_fallthru
      _
    // Predicated region
    $region14: #{tpu_custom_call.1} parent=1 // pred_check
      _
    $region15: #{tpu_custom_call.1} parent=1 // pred_check_branch
      %39 = sbr.rel (0) target = $region17
    $region16: #{tpu_custom_call.1} parent=1 // pred_region
      %41 = dma.done [#allocation6], 2048
    $region17: #{tpu_custom_call.1} parent=1 // pred_fallthru
      _
    %v42 = vld [vmem:[#allocation2] sm:$0x1]
    %v43 = vlaneseq
    %v44 = vshrl.u32 %v43, 7
    %v45 = vadd.s32 %v44, 8
    %v46 = vadd.s32 %v44, 16
    %v47 = vadd.s32 %v44, 24
    %v48 = vadd.s32 %v44, 32
    %v49 = vadd.s32 %v44, 40
    %v50 = vadd.s32 %v44, 48
    %v51 = vadd.s32 %v44, 56
    %v52 = vadd.s32 %v44, 64
    %v53 = vadd.s32 %v44, 72
    %v54 = vadd.s32 %v44, 80
    %v55 = vadd.s32 %v44, 88
    %v56 = vadd.s32 %v44, 96
    %v57 = vadd.s32 %v44, 104
    %v58 = vadd.s32 %v44, 112
    %v59 = vadd.s32 %v44, 120
    %v60 = vperm.slane %v42, 0
    %vm61 = vcmp.eq.s32.totalorder %v44, %v60
    %vm62 = vcmp.eq.s32.totalorder %v45, %v60
    %vm63 = vcmp.eq.s32.totalorder %v46, %v60
    %vm64 = vcmp.eq.s32.totalorder %v47, %v60
    %vm65 = vcmp.eq.s32.totalorder %v48, %v60
    %vm66 = vcmp.eq.s32.totalorder %v49, %v60
    %vm67 = vcmp.eq.s32.totalorder %v50, %v60
    %vm68 = vcmp.eq.s32.totalorder %v51, %v60
    %vm69 = vcmp.eq.s32.totalorder %v52, %v60
    %vm70 = vcmp.eq.s32.totalorder %v53, %v60
    %vm71 = vcmp.eq.s32.totalorder %v54, %v60
    %vm72 = vcmp.eq.s32.totalorder %v55, %v60
    %vm73 = vcmp.eq.s32.totalorder %v56, %v60
    %vm74 = vcmp.eq.s32.totalorder %v57, %v60
    %vm75 = vcmp.eq.s32.totalorder %v58, %v60
    %vm76 = vcmp.eq.s32.totalorder %v59, %v60
    %v77 = vsel %vm61, 1, 0
    %v78 = vsel %vm62, 1, 0
    %v79 = vsel %vm63, 1, 0
    %v80 = vsel %vm64, 1, 0
    %v81 = vsel %vm65, 1, 0
    %v82 = vsel %vm66, 1, 0
    %v83 = vsel %vm67, 1, 0
    %v84 = vsel %vm68, 1, 0
    %v85 = vsel %vm69, 1, 0
    %v86 = vsel %vm70, 1, 0
    %v87 = vsel %vm71, 1, 0
    %v88 = vsel %vm72, 1, 0
    %v89 = vsel %vm73, 1, 0
    %v90 = vsel %vm74, 1, 0
    %v91 = vsel %vm75, 1, 0
    %v92 = vsel %vm76, 1, 0
    %v93 = vcvt.s32.f32 %v77
    %v94 = vcvt.s32.f32 %v78
    %v95 = vcvt.s32.f32 %v79
    %v96 = vcvt.s32.f32 %v80
    %v97 = vcvt.s32.f32 %v81
    %v98 = vcvt.s32.f32 %v82
    %v99 = vcvt.s32.f32 %v83
    %v100 = vcvt.s32.f32 %v84
    %v101 = vcvt.s32.f32 %v85
    %v102 = vcvt.s32.f32 %v86
    %v103 = vcvt.s32.f32 %v87
    %v104 = vcvt.s32.f32 %v88
    %v105 = vcvt.s32.f32 %v89
    %v106 = vcvt.s32.f32 %v90
    %v107 = vcvt.s32.f32 %v91
    %v108 = vcvt.s32.f32 %v92
    %v109 = vld [vmem:[#allocation5] sm:$0xff]
    %v110 = vld [vmem:[#allocation5 + $0x8] sm:$0xff]
    %v111 = vld [vmem:[#allocation5 + $0x10] sm:$0xff]
    %v112 = vld [vmem:[#allocation5 + $0x18] sm:$0xff]
    %v113 = vld [vmem:[#allocation5 + $0x20] sm:$0xff]
    %v114 = vld [vmem:[#allocation5 + $0x28] sm:$0xff]
    %v115 = vld [vmem:[#allocation5 + $0x30] sm:$0xff]
    %v116 = vld [vmem:[#allocation5 + $0x38] sm:$0xff]
    %v117 = vld [vmem:[#allocation5 + $0x40] sm:$0xff]
    %v118 = vld [vmem:[#allocation5 + $0x48] sm:$0xff]
    %v119 = vld [vmem:[#allocation5 + $0x50] sm:$0xff]
    %v120 = vld [vmem:[#allocation5 + $0x58] sm:$0xff]
    %v121 = vld [vmem:[#allocation5 + $0x60] sm:$0xff]
    %v122 = vld [vmem:[#allocation5 + $0x68] sm:$0xff]
    %v123 = vld [vmem:[#allocation5 + $0x70] sm:$0xff]
    %v124 = vld [vmem:[#allocation5 + $0x78] sm:$0xff]
    %125 = vxpose.xlu0.b32.start [1/16] %v93, 128
    %126 = vxpose.xlu0.b32.cont [2/16] %v94, 128
    %127 = vxpose.xlu0.b32.cont [3/16] %v95, 128
    %128 = vxpose.xlu0.b32.cont [4/16] %v96, 128
    %129 = vxpose.xlu0.b32.cont [5/16] %v97, 128
    %130 = vxpose.xlu0.b32.cont [6/16] %v98, 128
    %131 = vxpose.xlu0.b32.cont [7/16] %v99, 128
    %132 = vxpose.xlu0.b32.cont [8/16] %v100, 128
    %133 = vxpose.xlu0.b32.cont [9/16] %v101, 128
    %134 = vxpose.xlu0.b32.cont [10/16] %v102, 128
    %135 = vxpose.xlu0.b32.cont [11/16] %v103, 128
    %136 = vxpose.xlu0.b32.cont [12/16] %v104, 128
    %137 = vxpose.xlu0.b32.cont [13/16] %v105, 128
    %138 = vxpose.xlu0.b32.cont [14/16] %v106, 128
    %139 = vxpose.xlu0.b32.cont [15/16] %v107, 128
    %140 = vxpose.xlu0.b32.end [16/16] %v108, 128
    %v141 = vpop.trf.xlu0
    %v142 = vpop.trf.xlu0
    %v143 = vpop.trf.xlu0
    %v144 = vpop.trf.xlu0
    %v145 = vpop.trf.xlu0
    %v146 = vpop.trf.xlu0
    %v147 = vpop.trf.xlu0
    %v148 = vpop.trf.xlu0
    %v149 = vpop.trf.xlu0
    %v150 = vpop.trf.xlu0
    %v151 = vpop.trf.xlu0
    %v152 = vpop.trf.xlu0
    %v153 = vpop.trf.xlu0
    %v154 = vpop.trf.xlu0
    %v155 = vpop.trf.xlu0
    %v156 = vpop.trf.xlu0
    %v157 = vand.u32 %v124, 4294901760
    %158 = vmatpush.msra.mxu0 %v157
    %v159 = vand.u32 %v123, 4294901760
    %160 = vmatpush.msra.mxu0 %v159
    %v161 = vand.u32 %v122, 4294901760
    %162 = vmatpush.msra.mxu0 %v161
    %v163 = vand.u32 %v121, 4294901760
    %164 = vmatpush.msra.mxu0 %v163
    %v165 = vand.u32 %v120, 4294901760
    %166 = vmatpush.msra.mxu0 %v165
    %v167 = vand.u32 %v119, 4294901760
    %168 = vmatpush.msra.mxu0 %v167
    %v169 = vand.u32 %v118, 4294901760
    %170 = vmatpush.msra.mxu0 %v169
    %v171 = vand.u32 %v117, 4294901760
    %172 = vmatpush.msra.mxu0 %v171
    %v173 = vand.u32 %v116, 4294901760
    %174 = vmatpush.msra.mxu0 %v173
    %v175 = vand.u32 %v115, 4294901760
    %176 = vmatpush.msra.mxu0 %v175
    %v177 = vand.u32 %v114, 4294901760
    %178 = vmatpush.msra.mxu0 %v177
    %v179 = vand.u32 %v113, 4294901760
    %180 = vmatpush.msra.mxu0 %v179
    %v181 = vand.u32 %v112, 4294901760
    %182 = vmatpush.msra.mxu0 %v181
    %v183 = vand.u32 %v111, 4294901760
    %184 = vmatpush.msra.mxu0 %v183
    %v185 = vand.u32 %v110, 4294901760
    %186 = vmatpush.msra.mxu0 %v185
    %v187 = vand.u32 %v109, 4294901760
    %188 = vmatpush.msra.mxu0 %v187
    %v189 = vand.u32 %v141, 4294901760
    %v190 = vsub.f32 %v141, %v189
    %v191 = vand.u32 %v190, 4294901760
    %v192 = vsub.f32 %v190, %v191
    %v193 = vand.u32 %v192, 4294901760
    %194 = vmatmul.f32.gmra.mxu0 %v193
    %v195 = vpop.f32.mrf.mxu0
    %v196 = vadd.f32 0.0, %v195
    %v197 = vand.u32 %v142, 4294901760
    %v198 = vsub.f32 %v142, %v197
    %v199 = vand.u32 %v198, 4294901760
    %v200 = vsub.f32 %v198, %v199
    %v201 = vand.u32 %v200, 4294901760
    %202 = vmatmul.f32.gmra.mxu0 %v201
    %v203 = vpop.f32.mrf.mxu0
    %v204 = vadd.f32 0.0, %v203
    %v205 = vand.u32 %v143, 4294901760
    %v206 = vsub.f32 %v143, %v205
    %v207 = vand.u32 %v206, 4294901760
    %v208 = vsub.f32 %v206, %v207
    %v209 = vand.u32 %v208, 4294901760
    %210 = vmatmul.f32.gmra.mxu0 %v209
    %v211 = vpop.f32.mrf.mxu0
    %v212 = vadd.f32 0.0, %v211
    %v213 = vand.u32 %v144, 4294901760
    %v214 = vsub.f32 %v144, %v213
    %v215 = vand.u32 %v214, 4294901760
    %v216 = vsub.f32 %v214, %v215
    %v217 = vand.u32 %v216, 4294901760
    %218 = vmatmul.f32.gmra.mxu0 %v217
    %v219 = vpop.f32.mrf.mxu0
    %v220 = vadd.f32 0.0, %v219
    %v221 = vand.u32 %v145, 4294901760
    %v222 = vsub.f32 %v145, %v221
    %v223 = vand.u32 %v222, 4294901760
    %v224 = vsub.f32 %v222, %v223
    %v225 = vand.u32 %v224, 4294901760
    %226 = vmatmul.f32.gmra.mxu0 %v225
    %v227 = vpop.f32.mrf.mxu0
    %v228 = vadd.f32 0.0, %v227
    %v229 = vand.u32 %v146, 4294901760
    %v230 = vsub.f32 %v146, %v229
    %v231 = vand.u32 %v230, 4294901760
    %v232 = vsub.f32 %v230, %v231
    %v233 = vand.u32 %v232, 4294901760
    %234 = vmatmul.f32.gmra.mxu0 %v233
    %v235 = vpop.f32.mrf.mxu0
    %v236 = vadd.f32 0.0, %v235
    %v237 = vand.u32 %v147, 4294901760
    %v238 = vsub.f32 %v147, %v237
    %v239 = vand.u32 %v238, 4294901760
    %v240 = vsub.f32 %v238, %v239
    %v241 = vand.u32 %v240, 4294901760
    %242 = vmatmul.f32.gmra.mxu0 %v241
    %v243 = vpop.f32.mrf.mxu0
    %v244 = vadd.f32 0.0, %v243
    %v245 = vand.u32 %v148, 4294901760
    %v246 = vsub.f32 %v148, %v245
    %v247 = vand.u32 %v246, 4294901760
    %v248 = vsub.f32 %v246, %v247
    %v249 = vand.u32 %v248, 4294901760
    %250 = vmatmul.f32.gmra.mxu0 %v249
    %v251 = vpop.f32.mrf.mxu0
    %v252 = vadd.f32 0.0, %v251
    %v253 = vand.u32 %v149, 4294901760
    %v254 = vsub.f32 %v149, %v253
    %v255 = vand.u32 %v254, 4294901760
    %v256 = vsub.f32 %v254, %v255
    %v257 = vand.u32 %v256, 4294901760
    %258 = vmatmul.f32.gmra.mxu0 %v257
    %v259 = vpop.f32.mrf.mxu0
    %v260 = vadd.f32 0.0, %v259
    %v261 = vand.u32 %v150, 4294901760
    %v262 = vsub.f32 %v150, %v261
    %v263 = vand.u32 %v262, 4294901760
    %v264 = vsub.f32 %v262, %v263
    %v265 = vand.u32 %v264, 4294901760
    %266 = vmatmul.f32.gmra.mxu0 %v265
    %v267 = vpop.f32.mrf.mxu0
    %v268 = vadd.f32 0.0, %v267
    %v269 = vand.u32 %v151, 4294901760
    %v270 = vsub.f32 %v151, %v269
    %v271 = vand.u32 %v270, 4294901760
    %v272 = vsub.f32 %v270, %v271
    %v273 = vand.u32 %v272, 4294901760
    %274 = vmatmul.f32.gmra.mxu0 %v273
    %v275 = vpop.f32.mrf.mxu0
    %v276 = vadd.f32 0.0, %v275
    %v277 = vand.u32 %v152, 4294901760
    %v278 = vsub.f32 %v152, %v277
    %v279 = vand.u32 %v278, 4294901760
    %v280 = vsub.f32 %v278, %v279
    %v281 = vand.u32 %v280, 4294901760
    %282 = vmatmul.f32.gmra.mxu0 %v281
    %v283 = vpop.f32.mrf.mxu0
    %v284 = vadd.f32 0.0, %v283
    %v285 = vand.u32 %v153, 4294901760
    %v286 = vsub.f32 %v153, %v285
    %v287 = vand.u32 %v286, 4294901760
    %v288 = vsub.f32 %v286, %v287
    %v289 = vand.u32 %v288, 4294901760
    %290 = vmatmul.f32.gmra.mxu0 %v289
    %v291 = vpop.f32.mrf.mxu0
    %v292 = vadd.f32 0.0, %v291
    %v293 = vand.u32 %v154, 4294901760
    %v294 = vsub.f32 %v154, %v293
    %v295 = vand.u32 %v294, 4294901760
    %v296 = vsub.f32 %v294, %v295
    %v297 = vand.u32 %v296, 4294901760
    %298 = vmatmul.f32.gmra.mxu0 %v297
    %v299 = vpop.f32.mrf.mxu0
    %v300 = vadd.f32 0.0, %v299
    %v301 = vand.u32 %v155, 4294901760
    %v302 = vsub.f32 %v155, %v301
    %v303 = vand.u32 %v302, 4294901760
    %v304 = vsub.f32 %v302, %v303
    %v305 = vand.u32 %v304, 4294901760
    %306 = vmatmul.f32.gmra.mxu0 %v305
    %v307 = vpop.f32.mrf.mxu0
    %v308 = vadd.f32 0.0, %v307
    %v309 = vand.u32 %v156, 4294901760
    %v310 = vsub.f32 %v156, %v309
    %v311 = vand.u32 %v310, 4294901760
    %v312 = vsub.f32 %v310, %v311
    %v313 = vand.u32 %v312, 4294901760
    %314 = vmatmul.f32.gmra.mxu0 %v313
    %v315 = vpop.f32.mrf.mxu0
    %v316 = vadd.f32 0.0, %v315
    %317 = vdwg.mxu0
    %v318 = vand.u32 %v124, 4294901760
    %v319 = vsub.f32 %v124, %v318
    %v320 = vand.u32 %v319, 4294901760
    %v321 = vsub.f32 %v319, %v320
    %v322 = vand.u32 %v321, 4294901760
    %323 = vmatpush.msra.mxu0 %v322
    %v324 = vand.u32 %v123, 4294901760
    %v325 = vsub.f32 %v123, %v324
    %v326 = vand.u32 %v325, 4294901760
    %v327 = vsub.f32 %v325, %v326
    %v328 = vand.u32 %v327, 4294901760
    %329 = vmatpush.msra.mxu0 %v328
    %v330 = vand.u32 %v122, 4294901760
    %v331 = vsub.f32 %v122, %v330
    %v332 = vand.u32 %v331, 4294901760
    %v333 = vsub.f32 %v331, %v332
    %v334 = vand.u32 %v333, 4294901760
    %335 = vmatpush.msra.mxu0 %v334
    %v336 = vand.u32 %v121, 4294901760
    %v337 = vsub.f32 %v121, %v336
    %v338 = vand.u32 %v337, 4294901760
    %v339 = vsub.f32 %v337, %v338
    %v340 = vand.u32 %v339, 4294901760
    %341 = vmatpush.msra.mxu0 %v340
    %v342 = vand.u32 %v120, 4294901760
    %v343 = vsub.f32 %v120, %v342
    %v344 = vand.u32 %v343, 4294901760
    %v345 = vsub.f32 %v343, %v344
    %v346 = vand.u32 %v345, 4294901760
    %347 = vmatpush.msra.mxu0 %v346
    %v348 = vand.u32 %v119, 4294901760
    %v349 = vsub.f32 %v119, %v348
    %v350 = vand.u32 %v349, 4294901760
    %v351 = vsub.f32 %v349, %v350
    %v352 = vand.u32 %v351, 4294901760
    %353 = vmatpush.msra.mxu0 %v352
    %v354 = vand.u32 %v118, 4294901760
    %v355 = vsub.f32 %v118, %v354
    %v356 = vand.u32 %v355, 4294901760
    %v357 = vsub.f32 %v355, %v356
    %v358 = vand.u32 %v357, 4294901760
    %359 = vmatpush.msra.mxu0 %v358
    %v360 = vand.u32 %v117, 4294901760
    %v361 = vsub.f32 %v117, %v360
    %v362 = vand.u32 %v361, 4294901760
    %v363 = vsub.f32 %v361, %v362
    %v364 = vand.u32 %v363, 4294901760
    %365 = vmatpush.msra.mxu0 %v364
    %v366 = vand.u32 %v116, 4294901760
    %v367 = vsub.f32 %v116, %v366
    %v368 = vand.u32 %v367, 4294901760
    %v369 = vsub.f32 %v367, %v368
    %v370 = vand.u32 %v369, 4294901760
    %371 = vmatpush.msra.mxu0 %v370
    %v372 = vand.u32 %v115, 4294901760
    %v373 = vsub.f32 %v115, %v372
    %v374 = vand.u32 %v373, 4294901760
    %v375 = vsub.f32 %v373, %v374
    %v376 = vand.u32 %v375, 4294901760
    %377 = vmatpush.msra.mxu0 %v376
    %v378 = vand.u32 %v114, 4294901760
    %v379 = vsub.f32 %v114, %v378
    %v380 = vand.u32 %v379, 4294901760
    %v381 = vsub.f32 %v379, %v380
    %v382 = vand.u32 %v381, 4294901760
    %383 = vmatpush.msra.mxu0 %v382
    %v384 = vand.u32 %v113, 4294901760
    %v385 = vsub.f32 %v113, %v384
    %v386 = vand.u32 %v385, 4294901760
    %v387 = vsub.f32 %v385, %v386
    %v388 = vand.u32 %v387, 4294901760
    %389 = vmatpush.msra.mxu0 %v388
    %v390 = vand.u32 %v112, 4294901760
    %v391 = vsub.f32 %v112, %v390
    %v392 = vand.u32 %v391, 4294901760
    %v393 = vsub.f32 %v391, %v392
    %v394 = vand.u32 %v393, 4294901760
    %395 = vmatpush.msra.mxu0 %v394
    %v396 = vand.u32 %v111, 4294901760
    %v397 = vsub.f32 %v111, %v396
    %v398 = vand.u32 %v397, 4294901760
    %v399 = vsub.f32 %v397, %v398
    %v400 = vand.u32 %v399, 4294901760
    %401 = vmatpush.msra.mxu0 %v400
    %v402 = vand.u32 %v110, 4294901760
    %v403 = vsub.f32 %v110, %v402
    %v404 = vand.u32 %v403, 4294901760
    %v405 = vsub.f32 %v403, %v404
    %v406 = vand.u32 %v405, 4294901760
    %407 = vmatpush.msra.mxu0 %v406
    %v408 = vand.u32 %v109, 4294901760
    %v409 = vsub.f32 %v109, %v408
    %v410 = vand.u32 %v409, 4294901760
    %v411 = vsub.f32 %v409, %v410
    %v412 = vand.u32 %v411, 4294901760
    %413 = vmatpush.msra.mxu0 %v412
    %v414 = vand.u32 %v141, 4294901760
    %415 = vmatmul.f32.gmra.mxu0 %v414
    %v416 = vpop.f32.mrf.mxu0
    %v417 = vadd.f32 %v196, %v416
    %v418 = vand.u32 %v142, 4294901760
    %419 = vmatmul.f32.gmra.mxu0 %v418
    %v420 = vpop.f32.mrf.mxu0
    %v421 = vadd.f32 %v204, %v420
    %v422 = vand.u32 %v143, 4294901760
    %423 = vmatmul.f32.gmra.mxu0 %v422
    %v424 = vpop.f32.mrf.mxu0
    %v425 = vadd.f32 %v212, %v424
    %v426 = vand.u32 %v144, 4294901760
    %427 = vmatmul.f32.gmra.mxu0 %v426
    %v428 = vpop.f32.mrf.mxu0
    %v429 = vadd.f32 %v220, %v428
    %v430 = vand.u32 %v145, 4294901760
    %431 = vmatmul.f32.gmra.mxu0 %v430
    %v432 = vpop.f32.mrf.mxu0
    %v433 = vadd.f32 %v228, %v432
    %v434 = vand.u32 %v146, 4294901760
    %435 = vmatmul.f32.gmra.mxu0 %v434
    %v436 = vpop.f32.mrf.mxu0
    %v437 = vadd.f32 %v236, %v436
    %v438 = vand.u32 %v147, 4294901760
    %439 = vmatmul.f32.gmra.mxu0 %v438
    %v440 = vpop.f32.mrf.mxu0
    %v441 = vadd.f32 %v244, %v440
    %v442 = vand.u32 %v148, 4294901760
    %443 = vmatmul.f32.gmra.mxu0 %v442
    %v444 = vpop.f32.mrf.mxu0
    %v445 = vadd.f32 %v252, %v444
    %v446 = vand.u32 %v149, 4294901760
    %447 = vmatmul.f32.gmra.mxu0 %v446
    %v448 = vpop.f32.mrf.mxu0
    %v449 = vadd.f32 %v260, %v448
    %v450 = vand.u32 %v150, 4294901760
    %451 = vmatmul.f32.gmra.mxu0 %v450
    %v452 = vpop.f32.mrf.mxu0
    %v453 = vadd.f32 %v268, %v452
    %v454 = vand.u32 %v151, 4294901760
    %455 = vmatmul.f32.gmra.mxu0 %v454
    %v456 = vpop.f32.mrf.mxu0
    %v457 = vadd.f32 %v276, %v456
    %v458 = vand.u32 %v152, 4294901760
    %459 = vmatmul.f32.gmra.mxu0 %v458
    %v460 = vpop.f32.mrf.mxu0
    %v461 = vadd.f32 %v284, %v460
    %v462 = vand.u32 %v153, 4294901760
    %463 = vmatmul.f32.gmra.mxu0 %v462
    %v464 = vpop.f32.mrf.mxu0
    %v465 = vadd.f32 %v292, %v464
    %v466 = vand.u32 %v154, 4294901760
    %467 = vmatmul.f32.gmra.mxu0 %v466
    %v468 = vpop.f32.mrf.mxu0
    %v469 = vadd.f32 %v300, %v468
    %v470 = vand.u32 %v155, 4294901760
    %471 = vmatmul.f32.gmra.mxu0 %v470
    %v472 = vpop.f32.mrf.mxu0
    %v473 = vadd.f32 %v308, %v472
    %v474 = vand.u32 %v156, 4294901760
    %475 = vmatmul.f32.gmra.mxu0 %v474
    %v476 = vpop.f32.mrf.mxu0
    %v477 = vadd.f32 %v316, %v476
    %478 = vdwg.mxu0
    %v479 = vand.u32 %v124, 4294901760
    %v480 = vsub.f32 %v124, %v479
    %481 = vmatpush.msra.mxu0 %v480
    %v482 = vand.u32 %v123, 4294901760
    %v483 = vsub.f32 %v123, %v482
    %484 = vmatpush.msra.mxu0 %v483
    %v485 = vand.u32 %v122, 4294901760
    %v486 = vsub.f32 %v122, %v485
    %487 = vmatpush.msra.mxu0 %v486
    %v488 = vand.u32 %v121, 4294901760
    %v489 = vsub.f32 %v121, %v488
    %490 = vmatpush.msra.mxu0 %v489
    %v491 = vand.u32 %v120, 4294901760
    %v492 = vsub.f32 %v120, %v491
    %493 = vmatpush.msra.mxu0 %v492
    %v494 = vand.u32 %v119, 4294901760
    %v495 = vsub.f32 %v119, %v494
    %496 = vmatpush.msra.mxu0 %v495
    %v497 = vand.u32 %v118, 4294901760
    %v498 = vsub.f32 %v118, %v497
    %499 = vmatpush.msra.mxu0 %v498
    %v500 = vand.u32 %v117, 4294901760
    %v501 = vsub.f32 %v117, %v500
    %502 = vmatpush.msra.mxu0 %v501
    %v503 = vand.u32 %v116, 4294901760
    %v504 = vsub.f32 %v116, %v503
    %505 = vmatpush.msra.mxu0 %v504
    %v506 = vand.u32 %v115, 4294901760
    %v507 = vsub.f32 %v115, %v506
    %508 = vmatpush.msra.mxu0 %v507
    %v509 = vand.u32 %v114, 4294901760
    %v510 = vsub.f32 %v114, %v509
    %511 = vmatpush.msra.mxu0 %v510
    %v512 = vand.u32 %v113, 4294901760
    %v513 = vsub.f32 %v113, %v512
    %514 = vmatpush.msra.mxu0 %v513
    %v515 = vand.u32 %v112, 4294901760
    %v516 = vsub.f32 %v112, %v515
    %517 = vmatpush.msra.mxu0 %v516
    %v518 = vand.u32 %v111, 4294901760
    %v519 = vsub.f32 %v111, %v518
    %520 = vmatpush.msra.mxu0 %v519
    %v521 = vand.u32 %v110, 4294901760
    %v522 = vsub.f32 %v110, %v521
    %523 = vmatpush.msra.mxu0 %v522
    %v524 = vand.u32 %v109, 4294901760
    %v525 = vsub.f32 %v109, %v524
    %526 = vmatpush.msra.mxu0 %v525
    %v527 = vand.u32 %v141, 4294901760
    %v528 = vsub.f32 %v141, %v527
    %529 = vmatmul.f32.gmra.mxu0 %v528
    %v530 = vpop.f32.mrf.mxu0
    %v531 = vadd.f32 %v417, %v530
    %v532 = vand.u32 %v142, 4294901760
    %v533 = vsub.f32 %v142, %v532
    %534 = vmatmul.f32.gmra.mxu0 %v533
    %v535 = vpop.f32.mrf.mxu0
    %v536 = vadd.f32 %v421, %v535
    %v537 = vand.u32 %v143, 4294901760
    %v538 = vsub.f32 %v143, %v537
    %539 = vmatmul.f32.gmra.mxu0 %v538
    %v540 = vpop.f32.mrf.mxu0
    %v541 = vadd.f32 %v425, %v540
    %v542 = vand.u32 %v144, 4294901760
    %v543 = vsub.f32 %v144, %v542
    %544 = vmatmul.f32.gmra.mxu0 %v543
    %v545 = vpop.f32.mrf.mxu0
    %v546 = vadd.f32 %v429, %v545
    %v547 = vand.u32 %v145, 4294901760
    %v548 = vsub.f32 %v145, %v547
    %549 = vmatmul.f32.gmra.mxu0 %v548
    %v550 = vpop.f32.mrf.mxu0
    %v551 = vadd.f32 %v433, %v550
    %v552 = vand.u32 %v146, 4294901760
    %v553 = vsub.f32 %v146, %v552
    %554 = vmatmul.f32.gmra.mxu0 %v553
    %v555 = vpop.f32.mrf.mxu0
    %v556 = vadd.f32 %v437, %v555
    %v557 = vand.u32 %v147, 4294901760
    %v558 = vsub.f32 %v147, %v557
    %559 = vmatmul.f32.gmra.mxu0 %v558
    %v560 = vpop.f32.mrf.mxu0
    %v561 = vadd.f32 %v441, %v560
    %v562 = vand.u32 %v148, 4294901760
    %v563 = vsub.f32 %v148, %v562
    %564 = vmatmul.f32.gmra.mxu0 %v563
    %v565 = vpop.f32.mrf.mxu0
    %v566 = vadd.f32 %v445, %v565
    %v567 = vand.u32 %v149, 4294901760
    %v568 = vsub.f32 %v149, %v567
    %569 = vmatmul.f32.gmra.mxu0 %v568
    %v570 = vpop.f32.mrf.mxu0
    %v571 = vadd.f32 %v449, %v570
    %v572 = vand.u32 %v150, 4294901760
    %v573 = vsub.f32 %v150, %v572
    %574 = vmatmul.f32.gmra.mxu0 %v573
    %v575 = vpop.f32.mrf.mxu0
    %v576 = vadd.f32 %v453, %v575
    %v577 = vand.u32 %v151, 4294901760
    %v578 = vsub.f32 %v151, %v577
    %579 = vmatmul.f32.gmra.mxu0 %v578
    %v580 = vpop.f32.mrf.mxu0
    %v581 = vadd.f32 %v457, %v580
    %v582 = vand.u32 %v152, 4294901760
    %v583 = vsub.f32 %v152, %v582
    %584 = vmatmul.f32.gmra.mxu0 %v583
    %v585 = vpop.f32.mrf.mxu0
    %v586 = vadd.f32 %v461, %v585
    %v587 = vand.u32 %v153, 4294901760
    %v588 = vsub.f32 %v153, %v587
    %589 = vmatmul.f32.gmra.mxu0 %v588
    %v590 = vpop.f32.mrf.mxu0
    %v591 = vadd.f32 %v465, %v590
    %v592 = vand.u32 %v154, 4294901760
    %v593 = vsub.f32 %v154, %v592
    %594 = vmatmul.f32.gmra.mxu0 %v593
    %v595 = vpop.f32.mrf.mxu0
    %v596 = vadd.f32 %v469, %v595
    %v597 = vand.u32 %v155, 4294901760
    %v598 = vsub.f32 %v155, %v597
    %599 = vmatmul.f32.gmra.mxu0 %v598
    %v600 = vpop.f32.mrf.mxu0
    %v601 = vadd.f32 %v473, %v600
    %v602 = vand.u32 %v156, 4294901760
    %v603 = vsub.f32 %v156, %v602
    %604 = vmatmul.f32.gmra.mxu0 %v603
    %v605 = vpop.f32.mrf.mxu0
    %v606 = vadd.f32 %v477, %v605
    %607 = vdwg.mxu0
    %v608 = vand.u32 %v124, 4294901760
    %609 = vmatpush.msra.mxu0 %v608
    %v610 = vand.u32 %v123, 4294901760
    %611 = vmatpush.msra.mxu0 %v610
    %v612 = vand.u32 %v122, 4294901760
    %613 = vmatpush.msra.mxu0 %v612
    %v614 = vand.u32 %v121, 4294901760
    %615 = vmatpush.msra.mxu0 %v614
    %v616 = vand.u32 %v120, 4294901760
    %617 = vmatpush.msra.mxu0 %v616
    %v618 = vand.u32 %v119, 4294901760
    %619 = vmatpush.msra.mxu0 %v618
    %v620 = vand.u32 %v118, 4294901760
    %621 = vmatpush.msra.mxu0 %v620
    %v622 = vand.u32 %v117, 4294901760
    %623 = vmatpush.msra.mxu0 %v622
    %v624 = vand.u32 %v116, 4294901760
    %625 = vmatpush.msra.mxu0 %v624
    %v626 = vand.u32 %v115, 4294901760
    %627 = vmatpush.msra.mxu0 %v626
    %v628 = vand.u32 %v114, 4294901760
    %629 = vmatpush.msra.mxu0 %v628
    %v630 = vand.u32 %v113, 4294901760
    %631 = vmatpush.msra.mxu0 %v630
    %v632 = vand.u32 %v112, 4294901760
    %633 = vmatpush.msra.mxu0 %v632
    %v634 = vand.u32 %v111, 4294901760
    %635 = vmatpush.msra.mxu0 %v634
    %v636 = vand.u32 %v110, 4294901760
    %637 = vmatpush.msra.mxu0 %v636
    %v638 = vand.u32 %v109, 4294901760
    %639 = vmatpush.msra.mxu0 %v638
    %v640 = vand.u32 %v141, 4294901760
    %v641 = vsub.f32 %v141, %v640
    %v642 = vand.u32 %v641, 4294901760
    %643 = vmatmul.f32.gmra.mxu0 %v642
    %v644 = vpop.f32.mrf.mxu0
    %v645 = vadd.f32 %v531, %v644
    %v646 = vand.u32 %v142, 4294901760
    %v647 = vsub.f32 %v142, %v646
    %v648 = vand.u32 %v647, 4294901760
    %649 = vmatmul.f32.gmra.mxu0 %v648
    %v650 = vpop.f32.mrf.mxu0
    %v651 = vadd.f32 %v536, %v650
    %v652 = vand.u32 %v143, 4294901760
    %v653 = vsub.f32 %v143, %v652
    %v654 = vand.u32 %v653, 4294901760
    %655 = vmatmul.f32.gmra.mxu0 %v654
    %v656 = vpop.f32.mrf.mxu0
    %v657 = vadd.f32 %v541, %v656
    %v658 = vand.u32 %v144, 4294901760
    %v659 = vsub.f32 %v144, %v658
    %v660 = vand.u32 %v659, 4294901760
    %661 = vmatmul.f32.gmra.mxu0 %v660
    %v662 = vpop.f32.mrf.mxu0
    %v663 = vadd.f32 %v546, %v662
    %v664 = vand.u32 %v145, 4294901760
    %v665 = vsub.f32 %v145, %v664
    %v666 = vand.u32 %v665, 4294901760
    %667 = vmatmul.f32.gmra.mxu0 %v666
    %v668 = vpop.f32.mrf.mxu0
    %v669 = vadd.f32 %v551, %v668
    %v670 = vand.u32 %v146, 4294901760
    %v671 = vsub.f32 %v146, %v670
    %v672 = vand.u32 %v671, 4294901760
    %673 = vmatmul.f32.gmra.mxu0 %v672
    %v674 = vpop.f32.mrf.mxu0
    %v675 = vadd.f32 %v556, %v674
    %v676 = vand.u32 %v147, 4294901760
    %v677 = vsub.f32 %v147, %v676
    %v678 = vand.u32 %v677, 4294901760
    %679 = vmatmul.f32.gmra.mxu0 %v678
    %v680 = vpop.f32.mrf.mxu0
    %v681 = vadd.f32 %v561, %v680
    %v682 = vand.u32 %v148, 4294901760
    %v683 = vsub.f32 %v148, %v682
    %v684 = vand.u32 %v683, 4294901760
    %685 = vmatmul.f32.gmra.mxu0 %v684
    %v686 = vpop.f32.mrf.mxu0
    %v687 = vadd.f32 %v566, %v686
    %v688 = vand.u32 %v149, 4294901760
    %v689 = vsub.f32 %v149, %v688
    %v690 = vand.u32 %v689, 4294901760
    %691 = vmatmul.f32.gmra.mxu0 %v690
    %v692 = vpop.f32.mrf.mxu0
    %v693 = vadd.f32 %v571, %v692
    %v694 = vand.u32 %v150, 4294901760
    %v695 = vsub.f32 %v150, %v694
    %v696 = vand.u32 %v695, 4294901760
    %697 = vmatmul.f32.gmra.mxu0 %v696
    %v698 = vpop.f32.mrf.mxu0
    %v699 = vadd.f32 %v576, %v698
    %v700 = vand.u32 %v151, 4294901760
    %v701 = vsub.f32 %v151, %v700
    %v702 = vand.u32 %v701, 4294901760
    %703 = vmatmul.f32.gmra.mxu0 %v702
    %v704 = vpop.f32.mrf.mxu0
    %v705 = vadd.f32 %v581, %v704
    %v706 = vand.u32 %v152, 4294901760
    %v707 = vsub.f32 %v152, %v706
    %v708 = vand.u32 %v707, 4294901760
    %709 = vmatmul.f32.gmra.mxu0 %v708
    %v710 = vpop.f32.mrf.mxu0
    %v711 = vadd.f32 %v586, %v710
    %v712 = vand.u32 %v153, 4294901760
    %v713 = vsub.f32 %v153, %v712
    %v714 = vand.u32 %v713, 4294901760
    %715 = vmatmul.f32.gmra.mxu0 %v714
    %v716 = vpop.f32.mrf.mxu0
    %v717 = vadd.f32 %v591, %v716
    %v718 = vand.u32 %v154, 4294901760
    %v719 = vsub.f32 %v154, %v718
    %v720 = vand.u32 %v719, 4294901760
    %721 = vmatmul.f32.gmra.mxu0 %v720
    %v722 = vpop.f32.mrf.mxu0
    %v723 = vadd.f32 %v596, %v722
    %v724 = vand.u32 %v155, 4294901760
    %v725 = vsub.f32 %v155, %v724
    %v726 = vand.u32 %v725, 4294901760
    %727 = vmatmul.f32.gmra.mxu0 %v726
    %v728 = vpop.f32.mrf.mxu0
    %v729 = vadd.f32 %v601, %v728
    %v730 = vand.u32 %v156, 4294901760
    %v731 = vsub.f32 %v156, %v730
    %v732 = vand.u32 %v731, 4294901760
    %733 = vmatmul.f32.gmra.mxu0 %v732
    %v734 = vpop.f32.mrf.mxu0
    %v735 = vadd.f32 %v606, %v734
    %736 = vdwg.mxu0
    %v737 = vand.u32 %v124, 4294901760
    %v738 = vsub.f32 %v124, %v737
    %v739 = vand.u32 %v738, 4294901760
    %740 = vmatpush.msra.mxu0 %v739
    %v741 = vand.u32 %v123, 4294901760
    %v742 = vsub.f32 %v123, %v741
    %v743 = vand.u32 %v742, 4294901760
    %744 = vmatpush.msra.mxu0 %v743
    %v745 = vand.u32 %v122, 4294901760
    %v746 = vsub.f32 %v122, %v745
    %v747 = vand.u32 %v746, 4294901760
    %748 = vmatpush.msra.mxu0 %v747
    %v749 = vand.u32 %v121, 4294901760
    %v750 = vsub.f32 %v121, %v749
    %v751 = vand.u32 %v750, 4294901760
    %752 = vmatpush.msra.mxu0 %v751
    %v753 = vand.u32 %v120, 4294901760
    %v754 = vsub.f32 %v120, %v753
    %v755 = vand.u32 %v754, 4294901760
    %756 = vmatpush.msra.mxu0 %v755
    %v757 = vand.u32 %v119, 4294901760
    %v758 = vsub.f32 %v119, %v757
    %v759 = vand.u32 %v758, 4294901760
    %760 = vmatpush.msra.mxu0 %v759
    %v761 = vand.u32 %v118, 4294901760
    %v762 = vsub.f32 %v118, %v761
    %v763 = vand.u32 %v762, 4294901760
    %764 = vmatpush.msra.mxu0 %v763
    %v765 = vand.u32 %v117, 4294901760
    %v766 = vsub.f32 %v117, %v765
    %v767 = vand.u32 %v766, 4294901760
    %768 = vmatpush.msra.mxu0 %v767
    %v769 = vand.u32 %v116, 4294901760
    %v770 = vsub.f32 %v116, %v769
    %v771 = vand.u32 %v770, 4294901760
    %772 = vmatpush.msra.mxu0 %v771
    %v773 = vand.u32 %v115, 4294901760
    %v774 = vsub.f32 %v115, %v773
    %v775 = vand.u32 %v774, 4294901760
    %776 = vmatpush.msra.mxu0 %v775
    %v777 = vand.u32 %v114, 4294901760
    %v778 = vsub.f32 %v114, %v777
    %v779 = vand.u32 %v778, 4294901760
    %780 = vmatpush.msra.mxu0 %v779
    %v781 = vand.u32 %v113, 4294901760
    %v782 = vsub.f32 %v113, %v781
    %v783 = vand.u32 %v782, 4294901760
    %784 = vmatpush.msra.mxu0 %v783
    %v785 = vand.u32 %v112, 4294901760
    %v786 = vsub.f32 %v112, %v785
    %v787 = vand.u32 %v786, 4294901760
    %788 = vmatpush.msra.mxu0 %v787
    %v789 = vand.u32 %v111, 4294901760
    %v790 = vsub.f32 %v111, %v789
    %v791 = vand.u32 %v790, 4294901760
    %792 = vmatpush.msra.mxu0 %v791
    %v793 = vand.u32 %v110, 4294901760
    %v794 = vsub.f32 %v110, %v793
    %v795 = vand.u32 %v794, 4294901760
    %796 = vmatpush.msra.mxu0 %v795
    %v797 = vand.u32 %v109, 4294901760
    %v798 = vsub.f32 %v109, %v797
    %v799 = vand.u32 %v798, 4294901760
    %800 = vmatpush.msra.mxu0 %v799
    %v801 = vand.u32 %v141, 4294901760
    %802 = vmatmul.f32.gmra.mxu0 %v801
    %v803 = vpop.f32.mrf.mxu0
    %v804 = vadd.f32 %v645, %v803
    %v805 = vand.u32 %v142, 4294901760
    %806 = vmatmul.f32.gmra.mxu0 %v805
    %v807 = vpop.f32.mrf.mxu0
    %v808 = vadd.f32 %v651, %v807
    %v809 = vand.u32 %v143, 4294901760
    %810 = vmatmul.f32.gmra.mxu0 %v809
    %v811 = vpop.f32.mrf.mxu0
    %v812 = vadd.f32 %v657, %v811
    %v813 = vand.u32 %v144, 4294901760
    %814 = vmatmul.f32.gmra.mxu0 %v813
    %v815 = vpop.f32.mrf.mxu0
    %v816 = vadd.f32 %v663, %v815
    %v817 = vand.u32 %v145, 4294901760
    %818 = vmatmul.f32.gmra.mxu0 %v817
    %v819 = vpop.f32.mrf.mxu0
    %v820 = vadd.f32 %v669, %v819
    %v821 = vand.u32 %v146, 4294901760
    %822 = vmatmul.f32.gmra.mxu0 %v821
    %v823 = vpop.f32.mrf.mxu0
    %v824 = vadd.f32 %v675, %v823
    %v825 = vand.u32 %v147, 4294901760
    %826 = vmatmul.f32.gmra.mxu0 %v825
    %v827 = vpop.f32.mrf.mxu0
    %v828 = vadd.f32 %v681, %v827
    %v829 = vand.u32 %v148, 4294901760
    %830 = vmatmul.f32.gmra.mxu0 %v829
    %v831 = vpop.f32.mrf.mxu0
    %v832 = vadd.f32 %v687, %v831
    %v833 = vand.u32 %v149, 4294901760
    %834 = vmatmul.f32.gmra.mxu0 %v833
    %v835 = vpop.f32.mrf.mxu0
    %v836 = vadd.f32 %v693, %v835
    %v837 = vand.u32 %v150, 4294901760
    %838 = vmatmul.f32.gmra.mxu0 %v837
    %v839 = vpop.f32.mrf.mxu0
    %v840 = vadd.f32 %v699, %v839
    %v841 = vand.u32 %v151, 4294901760
    %842 = vmatmul.f32.gmra.mxu0 %v841
    %v843 = vpop.f32.mrf.mxu0
    %v844 = vadd.f32 %v705, %v843
    %v845 = vand.u32 %v152, 4294901760
    %846 = vmatmul.f32.gmra.mxu0 %v845
    %v847 = vpop.f32.mrf.mxu0
    %v848 = vadd.f32 %v711, %v847
    %v849 = vand.u32 %v153, 4294901760
    %850 = vmatmul.f32.gmra.mxu0 %v849
    %v851 = vpop.f32.mrf.mxu0
    %v852 = vadd.f32 %v717, %v851
    %v853 = vand.u32 %v154, 4294901760
    %854 = vmatmul.f32.gmra.mxu0 %v853
    %v855 = vpop.f32.mrf.mxu0
    %v856 = vadd.f32 %v723, %v855
    %v857 = vand.u32 %v155, 4294901760
    %858 = vmatmul.f32.gmra.mxu0 %v857
    %v859 = vpop.f32.mrf.mxu0
    %v860 = vadd.f32 %v729, %v859
    %v861 = vand.u32 %v156, 4294901760
    %862 = vmatmul.f32.gmra.mxu0 %v861
    %v863 = vpop.f32.mrf.mxu0
    %v864 = vadd.f32 %v735, %v863
    %865 = vdwg.mxu0
    %v866 = vand.u32 %v124, 4294901760
    %867 = vmatpush.msra.mxu0 %v866
    %v868 = vand.u32 %v123, 4294901760
    %869 = vmatpush.msra.mxu0 %v868
    %v870 = vand.u32 %v122, 4294901760
    %871 = vmatpush.msra.mxu0 %v870
    %v872 = vand.u32 %v121, 4294901760
    %873 = vmatpush.msra.mxu0 %v872
    %v874 = vand.u32 %v120, 4294901760
    %875 = vmatpush.msra.mxu0 %v874
    %v876 = vand.u32 %v119, 4294901760
    %877 = vmatpush.msra.mxu0 %v876
    %v878 = vand.u32 %v118, 4294901760
    %879 = vmatpush.msra.mxu0 %v878
    %v880 = vand.u32 %v117, 4294901760
    %881 = vmatpush.msra.mxu0 %v880
    %v882 = vand.u32 %v116, 4294901760
    %883 = vmatpush.msra.mxu0 %v882
    %v884 = vand.u32 %v115, 4294901760
    %885 = vmatpush.msra.mxu0 %v884
    %v886 = vand.u32 %v114, 4294901760
    %887 = vmatpush.msra.mxu0 %v886
    %v888 = vand.u32 %v113, 4294901760
    %889 = vmatpush.msra.mxu0 %v888
    %v890 = vand.u32 %v112, 4294901760
    %891 = vmatpush.msra.mxu0 %v890
    %v892 = vand.u32 %v111, 4294901760
    %893 = vmatpush.msra.mxu0 %v892
    %v894 = vand.u32 %v110, 4294901760
    %895 = vmatpush.msra.mxu0 %v894
    %v896 = vand.u32 %v109, 4294901760
    %897 = vmatpush.msra.mxu0 %v896
    %v898 = vand.u32 %v141, 4294901760
    %899 = vmatmul.f32.gmra.mxu0 %v898
    %v900 = vpop.f32.mrf.mxu0
    %v901 = vadd.f32 %v804, %v900
    %v902 = vand.u32 %v142, 4294901760
    %903 = vmatmul.f32.gmra.mxu0 %v902
    %v904 = vpop.f32.mrf.mxu0
    %v905 = vadd.f32 %v808, %v904
    %v906 = vand.u32 %v143, 4294901760
    %907 = vmatmul.f32.gmra.mxu0 %v906
    %v908 = vpop.f32.mrf.mxu0
    %v909 = vadd.f32 %v812, %v908
    %v910 = vand.u32 %v144, 4294901760
    %911 = vmatmul.f32.gmra.mxu0 %v910
    %v912 = vpop.f32.mrf.mxu0
    %v913 = vadd.f32 %v816, %v912
    %v914 = vand.u32 %v145, 4294901760
    %915 = vmatmul.f32.gmra.mxu0 %v914
    %v916 = vpop.f32.mrf.mxu0
    %v917 = vadd.f32 %v820, %v916
    %v918 = vand.u32 %v146, 4294901760
    %919 = vmatmul.f32.gmra.mxu0 %v918
    %v920 = vpop.f32.mrf.mxu0
    %v921 = vadd.f32 %v824, %v920
    %v922 = vand.u32 %v147, 4294901760
    %923 = vmatmul.f32.gmra.mxu0 %v922
    %v924 = vpop.f32.mrf.mxu0
    %v925 = vadd.f32 %v828, %v924
    %v926 = vand.u32 %v148, 4294901760
    %927 = vmatmul.f32.gmra.mxu0 %v926
    %v928 = vpop.f32.mrf.mxu0
    %v929 = vadd.f32 %v832, %v928
    %v930 = vand.u32 %v149, 4294901760
    %931 = vmatmul.f32.gmra.mxu0 %v930
    %v932 = vpop.f32.mrf.mxu0
    %v933 = vadd.f32 %v836, %v932
    %v934 = vand.u32 %v150, 4294901760
    %935 = vmatmul.f32.gmra.mxu0 %v934
    %v936 = vpop.f32.mrf.mxu0
    %v937 = vadd.f32 %v840, %v936
    %v938 = vand.u32 %v151, 4294901760
    %939 = vmatmul.f32.gmra.mxu0 %v938
    %v940 = vpop.f32.mrf.mxu0
    %v941 = vadd.f32 %v844, %v940
    %v942 = vand.u32 %v152, 4294901760
    %943 = vmatmul.f32.gmra.mxu0 %v942
    %v944 = vpop.f32.mrf.mxu0
    %v945 = vadd.f32 %v848, %v944
    %v946 = vand.u32 %v153, 4294901760
    %947 = vmatmul.f32.gmra.mxu0 %v946
    %v948 = vpop.f32.mrf.mxu0
    %v949 = vadd.f32 %v852, %v948
    %v950 = vand.u32 %v154, 4294901760
    %951 = vmatmul.f32.gmra.mxu0 %v950
    %v952 = vpop.f32.mrf.mxu0
    %v953 = vadd.f32 %v856, %v952
    %v954 = vand.u32 %v155, 4294901760
    %955 = vmatmul.f32.gmra.mxu0 %v954
    %v956 = vpop.f32.mrf.mxu0
    %v957 = vadd.f32 %v860, %v956
    %v958 = vand.u32 %v156, 4294901760
    %959 = vmatmul.f32.gmra.mxu0 %v958
    %v960 = vpop.f32.mrf.mxu0
    %v961 = vadd.f32 %v864, %v960
    %962 = vdwg.mxu0
    %963 = vst [vmem:[#allocation7] sm:$0xff] %v901
    %964 = vst [vmem:[#allocation7 + $0x8] sm:$0xff] %v905
    %965 = vst [vmem:[#allocation7 + $0x10] sm:$0xff] %v909
    %966 = vst [vmem:[#allocation7 + $0x18] sm:$0xff] %v913
    %967 = vst [vmem:[#allocation7 + $0x20] sm:$0xff] %v917
    %968 = vst [vmem:[#allocation7 + $0x28] sm:$0xff] %v921
    %969 = vst [vmem:[#allocation7 + $0x30] sm:$0xff] %v925
    %970 = vst [vmem:[#allocation7 + $0x38] sm:$0xff] %v929
    %971 = vst [vmem:[#allocation7 + $0x40] sm:$0xff] %v933
    %972 = vst [vmem:[#allocation7 + $0x48] sm:$0xff] %v937
    %973 = vst [vmem:[#allocation7 + $0x50] sm:$0xff] %v941
    %974 = vst [vmem:[#allocation7 + $0x58] sm:$0xff] %v945
    %975 = vst [vmem:[#allocation7 + $0x60] sm:$0xff] %v949
    %976 = vst [vmem:[#allocation7 + $0x68] sm:$0xff] %v953
    %977 = vst [vmem:[#allocation7 + $0x70] sm:$0xff] %v957
    %978 = vst [vmem:[#allocation7 + $0x78] sm:$0xff] %v961
    // Predicated region
    $region18: #{tpu_custom_call.1} parent=1 // pred_check
      _
    $region19: #{tpu_custom_call.1} parent=1 // pred_check_branch
      %980 = sbr.rel (0) target = $region21
    $region20: #{tpu_custom_call.1} parent=1 // pred_region
      %982 = vsyncadd [#allocation4], 0
      %s983 = sshll.u32 [#allocation7], 4
      %s984 = int_to_ptr.vmem [resolvable:$true] %s983
      %s985 = sshll.u32 %s2, 4
      %s986 = int_to_ptr.hbm [resolvable:$true] %s985
      %991 = dma.vmem_to_hbm [thread:$0]  %s984, 2048, %s986, [#allocation4], 128, 128, 8
    $region21: #{tpu_custom_call.1} parent=1 // pred_fallthru
      _
    // Predicated region
    $region22: #{tpu_custom_call.1} parent=1 // pred_check
      _
    $region23: #{tpu_custom_call.1} parent=1 // pred_check_branch
      %993 = sbr.rel (0) target = $region25
    $region24: #{tpu_custom_call.1} parent=1 // pred_region
      %995 = dma.done [#allocation4], 2048
    $region25: #{tpu_custom_call.1} parent=1 // pred_fallthru
      _
    %996 = vsyncpa [#allocation3], 1
    %997 = vsyncpa [#allocation6], 1
    %998 = vsyncpa [#allocation4], 1

</llo_original>
